<compile_context>
chip_gen: v7x
topology: tpu7x:2x2x1
jax: 0.10.0
libtpu: 0.0.40
codegen_flags: <defaults>
</compile_context>

<pallas_src>
import jax
import jax.numpy as jnp
import numpy as np
from jax.experimental import pallas as pl
from jax.experimental.pallas import tpu as pltpu


def _rope_kernel(inv_freq_ref, pos_ref, x_ref, out_ref):
    # inv_freq_ref : VMEM (1, d_k)  f32  sign_j * theta**(-2*(j//2)/d_k)  (sign folded in)
    # pos_ref      : VMEM (TB, 1)   i32  token position per row
    # x_ref        : VMEM (TB, d_k)      input rows
    # out_ref      : VMEM (TB, d_k)      rotated rows
    tb, d_k = x_ref.shape
    x = x_ref[...].astype(jnp.float32)
    pos = pos_ref[...].astype(jnp.float32)               # (TB, 1); exact for pos < 2**24

    angle = pos * inv_freq_ref[...]                       # (TB, d_k), sign baked in
    cos = jnp.cos(angle)                                  # cos is even -> sign drops out
    sin = jnp.sin(angle)                                  # sin is odd  -> sign carried

    # Pair swap on the XLU: x_swap[..., 2i] = x[..., 2i+1], x_swap[..., 2i+1] = x[..., 2i]
    lane = jax.lax.broadcasted_iota(jnp.int32, (tb, d_k), 1)
    even = (lane % 2) == 0
    x_up = pltpu.roll(x, d_k - 1, axis=1)                 # x_up[j] = x[(j+1) % d_k]
    x_dn = pltpu.roll(x, 1, axis=1)                       # x_dn[j] = x[(j-1) % d_k]
    x_swap = jnp.where(even, x_up, x_dn)                  # circular wrap lands on the
                                                          # non-selected parity only
    out_ref[...] = (cos * x + sin * x_swap).astype(out_ref.dtype)


def _round_up(n: int, m: int) -> int:
    return ((n + m - 1) // m) * m


def rotary_positional_embedding(
    x: jax.Array,
    token_positions: jax.Array,
    *,
    theta: float,
    block_rows: int = 2048,      # tunable; sweep per generation
    donate_x: bool = False,      # set True only when the caller discards x
) -> jax.Array:
    """Pallas equivalent of RotaryPositionalEmbedding.forward(x, token_positions)."""
    orig_shape = x.shape
    d_k = orig_shape[-1]
    assert d_k % 2 == 0, "RoPE requires an even head dimension"

    # Per-lane inverse frequencies with the parity sign folded in (matches the
    # module's cos/sin buffers + repeat_interleave(2) + sign).
    power = -2.0 * jnp.arange(d_k // 2, dtype=jnp.float32) / d_k
    inv_freq = jnp.repeat(jnp.float32(theta) ** power, 2)           # (d_k,) f32
    sign = jnp.where(jnp.arange(d_k) % 2 == 0, -1.0, 1.0).astype(jnp.float32)
    inv_freq_signed = (sign * inv_freq)[None, :]                    # (1, d_k) f32

    # Flatten all leading dims into a row axis; broadcast positions to rows.
    pos = jnp.broadcast_to(token_positions, orig_shape[:-1]).astype(jnp.int32)
    x_flat = x.reshape(-1, d_k)
    pos_flat = pos.reshape(-1, 1)
    n = x_flat.shape[0]
    itemsize = jnp.dtype(x.dtype).itemsize

    # Row alignment = full sublane packing per vreg (8 rows f32, 16 bf16, 32 int8).
    row_align = 8 * max(1, 4 // itemsize)

    # Keep >= ~4 grid steps where possible so v7x's two TensorCores each get >= 2.
    tb = min(block_rows, max(row_align, _round_up(pl.cdiv(n, 4), row_align)))
    tb = _round_up(tb, row_align)

    # VMEM budget: x tile + out tile + lane-padded (TB,1) positions, double-buffered.
    dk_pad = _round_up(d_k, 128)
    bytes_per_row = 2 * dk_pad * itemsize + 128 * 4
    vmem_budget = 40 << 20                                  # safe under v7x's 64 MiB
    tb_vmem_max = max(row_align, (vmem_budget // (2 * bytes_per_row)) // row_align * row_align)
    tb = min(tb, tb_vmem_max)

    working_set = 2 * tb * bytes_per_row + 2 * 8 * dk_pad * 4 + (2 << 20)  # + headroom
    vmem_limit = int(min(48 << 20, max(working_set, 32 << 20)))

    grid = (pl.cdiv(n, tb),)    # no pad/slice: Pallas masks the ragged last block

    cost = pl.CostEstimate(
        flops=4 * n * d_k,
        transcendentals=2 * n * d_k,
        bytes_accessed=2 * n * d_k * itemsize + n * 4 + d_k * 4,
    )

    out = pl.pallas_call(
        _rope_kernel,
        out_shape=jax.ShapeDtypeStruct((n, d_k), x.dtype),
        grid_spec=pltpu.PrefetchScalarGridSpec(
            num_scalar_prefetch=0,
            grid=grid,
            in_specs=[
                pl.BlockSpec((1, d_k), lambda i: (0, 0)),    # inv_freq (resident constant)
                pl.BlockSpec((tb, 1), lambda i: (i, 0)),     # positions
                pl.BlockSpec((tb, d_k), lambda i: (i, 0)),   # x rows
            ],
            out_specs=pl.BlockSpec((tb, d_k), lambda i: (i, 0)),
        ),
        compiler_params=pltpu.CompilerParams(
            dimension_semantics=("parallel",),               # disjoint tiles -> both v7x TCs
            vmem_limit_bytes=vmem_limit,
        ),
        cost_estimate=cost,
        input_output_aliases=({2: 0} if donate_x else {}),
    )(inv_freq_signed, pos_flat, x_flat)

    return out.reshape(orig_shape)


def rope_reference(x, token_positions, *, theta, max_seq_len):
    """Pure-JAX transcription of the PyTorch module (buffers + gather)."""
    d_k = x.shape[-1]
    power = -2.0 * jnp.arange(d_k // 2, dtype=jnp.float32) / d_k
    inv_freq = float(theta) ** power                               # (d_k//2,)
    positions = jnp.arange(max_seq_len, dtype=jnp.float32)[:, None]
    angles = positions * inv_freq[None, :]                         # (max_seq_len, d_k//2)
    sin_t, cos_t = jnp.sin(angles), jnp.cos(angles)
    sign = jnp.where(jnp.arange(d_k) % 2 == 0, -1.0, 1.0)          # (-1)^(j+1)
    index = jnp.arange(d_k).reshape(-1, 2)[:, ::-1].reshape(-1)    # [1,0,3,2,...]
    cos = jnp.repeat(cos_t[token_positions], 2, axis=-1)
    sin = jnp.repeat(sin_t[token_positions], 2, axis=-1) * sign
    return cos * x + sin * x[..., index]


if __name__ == "__main__":
    d_k = 128            # lane-dense head dim (multiple of 128)
    theta = 10000.0
    max_seq_len = 64
    batch, seq = 2, 8

    key = jax.random.PRNGKey(0)
    k_x, k_pos, k_x2, k_pos2 = jax.random.split(key, 4)

    # Main case: divisible grid.
    x = jax.random.normal(k_x, (batch, seq, d_k), dtype=jnp.float32)
    token_positions = jax.random.randint(k_pos, (batch, seq), 0, max_seq_len, dtype=jnp.int32)

    out = rotary_positional_embedding(x, token_positions, theta=theta)
    out = jax.block_until_ready(out)
    ref = rope_reference(x, token_positions, theta=theta, max_seq_len=max_seq_len)
    assert out.shape == x.shape and out.dtype == x.dtype
    # Tolerance covers XLA-vs-Mosaic transcendental ulp differences; any
    # structural RoPE error would be O(1).
    np.testing.assert_allclose(np.asarray(out), np.asarray(ref), rtol=1e-5, atol=1e-4)

    # Ragged-tail case (n % TB != 0): exercises the new no-pad masked edge block.
    x2 = jax.random.normal(k_x2, (3, 5, d_k), dtype=jnp.float32)
    token_positions2 = jax.random.randint(k_pos2, (3, 5), 0, max_seq_len, dtype=jnp.int32)
    out2 = rotary_positional_embedding(x2, token_positions2, theta=theta, block_rows=8)
    out2 = jax.block_until_ready(out2)
    ref2 = rope_reference(x2, token_positions2, theta=theta, max_seq_len=max_seq_len)
    assert out2.shape == x2.shape and out2.dtype == x2.dtype
    np.testing.assert_allclose(np.asarray(out2), np.asarray(ref2), rtol=1e-5, atol=1e-4)

    print("KERNEL_OK")
</pallas_src>

<mosaic_0001>
module attributes {stable_mosaic.version = 11 : i64} {
  func.func @_rope_kernel(%arg0: i32, %arg1: memref<1x128xf32, #tpu.memory_space<vmem>>, %arg2: memref<8x1xi32, #tpu.memory_space<vmem>>, %arg3: memref<8x128xf32, #tpu.memory_space<vmem>>, %arg4: memref<8x128xf32, #tpu.memory_space<vmem>>) attributes {dimension_semantics = [#tpu.dimension_semantics<parallel>], iteration_bounds = array<i64: 2>, scalar_prefetch = 0 : i64, scratch_operands = 0 : i64, tpu.core_type = #tpu.core_type<tc>, window_params = [{pipeline_mode = #tpu.pipeline_mode<synchronous>, transform_indices = @transform_0, window_bounds = array<i64: 1, 128>}, {transform_indices = @transform_1, window_bounds = array<i64: 8, 1>}, {transform_indices = @transform_2, window_bounds = array<i64: 8, 128>}, {transform_indices = @transform_3, window_bounds = array<i64: 8, 128>}]} {
    %c0 = arith.constant 0 : index
    %c0_0 = arith.constant 0 : index
    %0 = vector.load %arg3[%c0, %c0_0] : memref<8x128xf32, #tpu.memory_space<vmem>>, vector<8x128xf32>
    %c0_1 = arith.constant 0 : index
    %c0_2 = arith.constant 0 : index
    %1 = vector.load %arg2[%c0_1, %c0_2] : memref<8x1xi32, #tpu.memory_space<vmem>>, vector<8x1xi32>
    %2 = arith.sitofp %1 : vector<8x1xi32> to vector<8x1xf32>
    %c0_3 = arith.constant 0 : index
    %c0_4 = arith.constant 0 : index
    %3 = vector.load %arg1[%c0_3, %c0_4] : memref<1x128xf32, #tpu.memory_space<vmem>>, vector<1x128xf32>
    %4 = vector.broadcast %2 : vector<8x1xf32> to vector<8x128xf32>
    %5 = vector.broadcast %3 : vector<1x128xf32> to vector<8x128xf32>
    %6 = arith.mulf %4, %5 : vector<8x128xf32>
    %7 = math.cos %6 : vector<8x128xf32>
    %8 = math.sin %6 : vector<8x128xf32>
    %9 = tpu.iota {dimensions = array<i32: 1>} : vector<8x128xi32>
    %c2_i32 = arith.constant 2 : i32
    %c0_i32 = arith.constant 0 : i32
    %10 = arith.cmpi eq, %c2_i32, %c0_i32 : i32
    %c1_i32 = arith.constant 1 : i32
    %11 = arith.select %10, %c1_i32, %c2_i32 : i32
    %12 = vector.broadcast %11 : i32 to vector<8x128xi32>
    %13 = arith.remsi %9, %12 : vector<8x128xi32>
    %c0_i32_5 = arith.constant 0 : i32
    %14 = vector.broadcast %c0_i32_5 : i32 to vector<8x128xi32>
    %15 = arith.cmpi ne, %13, %14 : vector<8x128xi32>
    %c0_i32_6 = arith.constant 0 : i32
    %16 = vector.broadcast %c0_i32_6 : i32 to vector<8x128xi32>
    %17 = arith.cmpi slt, %13, %16 : vector<8x128xi32>
    %c0_i32_7 = arith.constant 0 : i32
    %18 = arith.cmpi slt, %11, %c0_i32_7 : i32
    %19 = vector.broadcast %18 : i1 to vector<8x128xi1>
    %20 = vector.broadcast %19 : vector<8x128xi1> to vector<8x128xi1>
    %21 = arith.xori %17, %20 : vector<8x128xi1>
    %22 = arith.andi %21, %15 : vector<8x128xi1>
    %23 = vector.broadcast %11 : i32 to vector<8x128xi32>
    %24 = arith.addi %13, %23 : vector<8x128xi32>
    %25 = arith.select %22, %24, %13 : vector<8x128xi1>, vector<8x128xi32>
    %c0_i32_8 = arith.constant 0 : i32
    %26 = vector.broadcast %c0_i32_8 : i32 to vector<8x128xi32>
    %27 = arith.cmpi eq, %25, %26 : vector<8x128xi32>
    %c127_i32 = arith.constant 127 : i32
    %28 = tpu.dynamic_rotate %0 by %c127_i32 dim 1 : vector<8x128xf32>, i32 -> vector<8x128xf32>
    %c1_i32_9 = arith.constant 1 : i32
    %29 = tpu.dynamic_rotate %0 by %c1_i32_9 dim 1 : vector<8x128xf32>, i32 -> vector<8x128xf32>
    %30 = arith.select %27, %28, %29 : vector<8x128xi1>, vector<8x128xf32>
    %31 = arith.mulf %7, %0 : vector<8x128xf32>
    %32 = arith.mulf %8, %30 : vector<8x128xf32>
    %33 = arith.addf %31, %32 : vector<8x128xf32>
    %c0_10 = arith.constant 0 : index
    %c0_11 = arith.constant 0 : index
    %34 = vector.load %arg4[%c0_10, %c0_11] : memref<8x128xf32, #tpu.memory_space<vmem>>, vector<8x128xf32>
    tpu.vector_store %arg4[%c0_10, %c0_11], %33 {strides = array<i32>} : memref<8x128xf32, #tpu.memory_space<vmem>>, vector<8x128xf32>,
    return
  }
  func.func @transform_0(%arg0: i32) -> (i32, i32) {
    %c0_i32 = arith.constant 0 : i32
    %c0_i32_0 = arith.constant 0 : i32
    %c0_i32_1 = arith.constant 0 : i32
    return %c0_i32, %c0_i32_0 : i32, i32
  }
  func.func @transform_1(%arg0: i32) -> (i32, i32) {
    %c0_i32 = arith.constant 0 : i32
    %c0_i32_0 = arith.constant 0 : i32
    return %arg0, %c0_i32 : i32, i32
  }
  func.func @transform_2(%arg0: i32) -> (i32, i32) {
    %c0_i32 = arith.constant 0 : i32
    %c0_i32_0 = arith.constant 0 : i32
    return %arg0, %c0_i32 : i32, i32
  }
  func.func @transform_3(%arg0: i32) -> (i32, i32) {
    %c0_i32 = arith.constant 0 : i32
    %c0_i32_0 = arith.constant 0 : i32
    return %arg0, %c0_i32 : i32, i32
  }
}

</mosaic_0001>

<llo_original>
// kernel: tpu_custom_call.1
$region0: #{tpu_custom_call.1}
  #allocation0 [shape = 'u32[]', space=smem, size = 0x4, offset = 0x4, fixed_abs, tag = 'smem constant byte address 0x4 - core index']
  #allocation1 [shape = 'u32[144,128]{1,0:T(1,128)}', space=vmem, size = 0x12000, scoped, tag = 'internal scratch']
  %s0 = inlined_call_operand.vmem [shape: f32[1,128], index: 0, kind: input, shape index: {}]
  %s1 = inlined_call_operand.vmem [shape: s32[16,1], index: 1, kind: input, shape index: {}]
  %s2 = inlined_call_operand.vmem [shape: f32[16,128], index: 2, kind: input, shape index: {}]
  %s3 = inlined_call_operand.hbm [shape: f32[16,128], index: 3, kind: output, shape index: {}]
  %s4 = sld [smem:[#allocation0]]
  $region45: #{tpu_custom_call.1} parent=0
    _
  %s6 = ssub.s32 1, %s4
  %s7 = scalar_select 0, %s6, %s4
  $region1: #{tpu_custom_call.1} parent=0
    #allocation2 [shape = 'u8[8192]{0}', space=vmem, size = 0x2000, scoped, tag = 'output window, operand 0']
    #allocation3 [shape = 's32[2]{0}', space=sflag, size = 0x8, scoped, tag = 'scoped memory for tpu_custom_call.1']
    %8 = vsyncpa [#allocation3], 0
    %s9 = scalar_lea.sflag [#allocation3], 1
    %10 = vsyncpa %s9, 0
    loop: start=0, step=1, limit=4
    $region2: #{tpu_custom_call.1} parent=1 // loop_pre_header
      _
    $region3: #{tpu_custom_call.1} parent=1 // loop_header
      %s12 = sphi 0, %s16
      %p13 = scmp.ge.s32.totalorder %s12, 4
      %s20 = sphi 0, %s20
      %s22 = sphi 0, %s20
      %s23 = sphi 0, %s22
      %s37 = sphi 0, %s23
      %s43 = sphi 0, %s45
      %s46 = sphi 0, %s43
      %s47 = sphi 0, %s46
      %s63 = sphi 0, %s47
      %s69 = sphi 0, %s71
      %s72 = sphi 0, %s69
      %s73 = sphi 0, %s72
      %s89 = sphi 0, %s73
      %s95 = sphi 0, %s97
      %s98 = sphi 0, %s95
      %s99 = sphi 0, %s98
      %s115 = sphi 0, %s99
    $region4: #{tpu_custom_call.1} parent=1 // loop_header_branch
      %15 = sbr.rel (%p13) target = $region8
    $region5: #{tpu_custom_call.1} parent=1 // loop_body
      %s17 = ssub.s32 %s12, 1
      %s18 = ssub.s32 %s12, 2
      %s19 = sadd.s32 %s12, 1
      %s21 = sadd.s32 %s20, 1
      %p24 = scmp.eq.s32.totalorder %s12, 1
      %p25 = scmp.ne.s32.totalorder %s20, %s22
      %p26 = scmp.eq.s32.totalorder %s12, 0
      %p27 = por %p25, %p26
      %p28 = scmp.ne.s32.totalorder %s20, %s22
      %p29 = scmp.eq.s32.totalorder %s17, 1
      %p30 = por %p28, %p29
      %p31 = scmp.ne.s32.totalorder %s22, %s23
      %p32 = scmp.eq.s32.totalorder %s17, 0
      %p33 = por %p31, %p32
      %p34 = scmp.ne.s32.totalorder %s22, %s23
      %p35 = scmp.eq.s32.totalorder %s18, 1
      %p36 = por %p34, %p35
      %p38 = scmp.ne.s32.totalorder %s23, %s37
      %p39 = scmp.eq.s32.totalorder %s18, 0
      %p40 = por %p38, %p39
      %s41 = ssub.s32 %s12, %s19
      %p42 = scmp.eq.s32.totalorder %s41, 0
      %s44 = sadd.s32 %s43, 1
      %s45 = scalar_select %p42, %s43, %s44
      %p48 = pneg %p42
      %p49 = scmp.eq.s32.totalorder %s12, 1
      %p50 = por %p48, %p49
      %p51 = scmp.ne.s32.totalorder %s43, %s46
      %p52 = scmp.eq.s32.totalorder %s12, 0
      %p53 = por %p51, %p52
      %p54 = scmp.ne.s32.totalorder %s43, %s46
      %p55 = scmp.eq.s32.totalorder %s17, 1
      %p56 = por %p54, %p55
      %p57 = scmp.ne.s32.totalorder %s46, %s47
      %p58 = scmp.eq.s32.totalorder %s17, 0
      %p59 = por %p57, %p58
      %p60 = scmp.ne.s32.totalorder %s46, %s47
      %p61 = scmp.eq.s32.totalorder %s18, 1
      %p62 = por %p60, %p61
      %p64 = scmp.ne.s32.totalorder %s47, %s63
      %p65 = scmp.eq.s32.totalorder %s18, 0
      %p66 = por %p64, %p65
      %s67 = ssub.s32 %s12, %s19
      %p68 = scmp.eq.s32.totalorder %s67, 0
      %s70 = sadd.s32 %s69, 1
      %s71 = scalar_select %p68, %s69, %s70
      %p74 = pneg %p68
      %p75 = scmp.eq.s32.totalorder %s12, 1
      %p76 = por %p74, %p75
      %p77 = scmp.ne.s32.totalorder %s69, %s72
      %p78 = scmp.eq.s32.totalorder %s12, 0
      %p79 = por %p77, %p78
      %p80 = scmp.ne.s32.totalorder %s69, %s72
      %p81 = scmp.eq.s32.totalorder %s17, 1
      %p82 = por %p80, %p81
      %p83 = scmp.ne.s32.totalorder %s72, %s73
      %p84 = scmp.eq.s32.totalorder %s17, 0
      %p85 = por %p83, %p84
      %p86 = scmp.ne.s32.totalorder %s72, %s73
      %p87 = scmp.eq.s32.totalorder %s18, 1
      %p88 = por %p86, %p87
      %p90 = scmp.ne.s32.totalorder %s73, %s89
      %p91 = scmp.eq.s32.totalorder %s18, 0
      %p92 = por %p90, %p91
      %s93 = ssub.s32 %s12, %s19
      %p94 = scmp.eq.s32.totalorder %s93, 0
      %s96 = sadd.s32 %s95, 1
      %s97 = scalar_select %p94, %s95, %s96
      %p100 = pneg %p94
      %p101 = scmp.eq.s32.totalorder %s12, 1
      %p102 = por %p100, %p101
      %p103 = scmp.ne.s32.totalorder %s95, %s98
      %p104 = scmp.eq.s32.totalorder %s12, 0
      %p105 = por %p103, %p104
      %p106 = scmp.ne.s32.totalorder %s95, %s98
      %p107 = scmp.eq.s32.totalorder %s17, 1
      %p108 = por %p106, %p107
      %p109 = scmp.ne.s32.totalorder %s98, %s99
      %p110 = scmp.eq.s32.totalorder %s17, 0
      %p111 = por %p109, %p110
      %p112 = scmp.ne.s32.totalorder %s98, %s99
      %p113 = scmp.eq.s32.totalorder %s18, 1
      %p114 = por %p112, %p113
      %p116 = scmp.ne.s32.totalorder %s99, %s115
      %p117 = scmp.eq.s32.totalorder %s18, 0
      %p118 = por %p116, %p117
      %p119 = scmp.le.s32.totalorder 1, %s12
      %p120 = scmp.lt.s32.totalorder %s12, 3
      %p121 = pnand %p119, %p120
      %p122 = pneg %p121
      // Predicated region
      $region9: #{tpu_custom_call.1} parent=5 // pred_check
        _
      $region10: #{tpu_custom_call.1} parent=5 // pred_check_branch
        %124 = sbr.rel (%p121) target = $region12
      $region11: #{tpu_custom_call.1} parent=5 // pred_region
        %s125 = ssub.s32 %s12, 1
        // Predicated region
        $region13: #{tpu_custom_call.1} parent=11 // pred_check
          %p126 = pneg %p33
        $region14: #{tpu_custom_call.1} parent=11 // pred_check_branch
          %128 = sbr.rel (%p126) target = $region16
        $region15: #{tpu_custom_call.1} parent=11 // pred_region
          _
        $region16: #{tpu_custom_call.1} parent=11 // pred_fallthru
          _
      $region12: #{tpu_custom_call.1} parent=5 // pred_fallthru
        _
      %p129 = scmp.lt.s32.totalorder %s12, 2
      // Predicated region
      $region17: #{tpu_custom_call.1} parent=5 // pred_check
        %p130 = pneg %p129
      $region18: #{tpu_custom_call.1} parent=5 // pred_check_branch
        %132 = sbr.rel (%p130) target = $region20
      $region19: #{tpu_custom_call.1} parent=5 // pred_region
        // Predicated region
        $region21: #{tpu_custom_call.1} parent=19 // pred_check
          %p133 = pneg %p53
        $region22: #{tpu_custom_call.1} parent=19 // pred_check_branch
          %135 = sbr.rel (%p133) target = $region24
        $region23: #{tpu_custom_call.1} parent=19 // pred_region
          %p136 = scmp.lt.s32.totalorder %s12, 1
          %s137 = scalar_select %p136, %s12, 1
          %s138 = smul.addr %s137, 8
          %s139 = scalar_lea.vmem %s1, %s138
        $region24: #{tpu_custom_call.1} parent=19 // pred_fallthru
          _
        // Predicated region
        $region25: #{tpu_custom_call.1} parent=19 // pred_check
          %p140 = pneg %p79
        $region26: #{tpu_custom_call.1} parent=19 // pred_check_branch
          %142 = sbr.rel (%p140) target = $region28
        $region27: #{tpu_custom_call.1} parent=19 // pred_region
          %p143 = scmp.lt.s32.totalorder %s12, 1
          %s144 = scalar_select %p143, %s12, 1
          %s145 = smul.addr %s144, 8
          %s146 = scalar_lea.vmem %s2, %s145
        $region28: #{tpu_custom_call.1} parent=19 // pred_fallthru
          _
      $region20: #{tpu_custom_call.1} parent=5 // pred_fallthru
        _
      %p147 = scmp.le.s32.totalorder 1, %s12
      %p148 = scmp.lt.s32.totalorder %s12, 3
      %p149 = pnand %p147, %p148
      %p150 = pneg %p149
      // Predicated region
      $region29: #{tpu_custom_call.1} parent=5 // pred_check
        _
      $region30: #{tpu_custom_call.1} parent=5 // pred_check_branch
        %152 = sbr.rel (%p149) target = $region32
      $region31: #{tpu_custom_call.1} parent=5 // pred_region
        %s153 = ssub.s32 %s12, 1
        %p154 = pneg %p33
        %p155 = pneg %p30
        %p156 = scmp.lt.s32.totalorder %s17, 1
        %s157 = scalar_select %p156, %s17, 1
        %s158 = smul.addr %s157, 8
        %s159 = scalar_lea.vmem %s1, %s158
        %p160 = pneg %p59
        %p161 = pneg %p56
        %p162 = scmp.lt.s32.totalorder %s17, 1
        %s163 = scalar_select %p162, %s17, 1
        %s164 = smul.addr %s163, 8
        %s165 = scalar_lea.vmem %s2, %s164
        %p166 = pneg %p85
        %p167 = pneg %p82
        %p168 = pneg %p111
        %p169 = pneg %p108
        %s170 = sand.u32 %s98, 1
        %s171 = scalar_lea.sflag [#allocation3], %s170
        %s172 = sand.u32 %s98, 1
        %s173 = smul.addr %s172, 8
        %s174 = scalar_lea.vmem [#allocation2], %s173
        %p175 = scmp.lt.s32.totalorder %s17, 1
        %s176 = scalar_select %p175, %s17, 1
        %s177 = smul.addr %s176, 8
        %s178 = scalar_lea.vmem %s1, %s177
        %p179 = scmp.lt.s32.totalorder %s17, 1
        %s180 = scalar_select %p179, %s17, 1
        %s181 = smul.addr %s180, 8
        %s182 = scalar_lea.vmem %s2, %s181
        %v183 = vld [vmem:[%s182] sm:$0xff]
        %v184 = vld [vmem:[%s178] sm:$0xff]
        %v185 = vcvt.s32.f32 %v184
        %v186 = vld [vmem:[%s0] sm:$0x1]
        %188 = vset.pattern.permute.xlu0 0
        %189 = vperm.xlu0 %188, %v185
        %v190 = vpop.permute.xlu0 %189
        %v193 = vlaneseq
        %v194 = vshrl.u32 %v193, 7
        %v195 = vsub.s32 0, %v194
        %v196 = vrot.slane %v186, %v195
        %v198 = vmul.f32 %v190, %v196
        %v199 = vand.u32 2147483647, %v198
        %vm200 = vcmp.le.f32.partialorder %v199, 0.7853982
        %vm201 = vcmp.lt.s32.totalorder %v198, 0
        %v202 = vand.u32 %v198, 2139095040
        %v203 = vshrl.u32 %v202, 23
        %v204 = vsub.s32 %v203, 127
        %v205 = vand.u32 2147483647, %v198
        %v206 = vand.u32 %v205, 8388607
        %v207 = vor.u32 %v206, 8388608
        %v208 = vsub.s32 0, %v207
        %v209 = vadd.s32 %v204, 1
        %vm210 = vcmp.gt.s32.totalorder %v209, 0
        %v211 = vsel %vm210, %v209, 0
        %v212 = vshrl.u32 %v211, 5
        %v213 = vand.u32 %v211, 31
        %v214 = vsub.s32 32, %v213
        %v215 = vshrl.u32 683565275, %v214
        %v216 = vshll.u32 683565275, %v213
        %v217 = vshrl.u32 2475754826, %v214
        %v218 = vor.u32 %v216, %v217
        %v219 = vshll.u32 2475754826, %v213
        %v220 = vshrl.u32 2131351028, %v214
        %v221 = vor.u32 %v219, %v220
        %v222 = vshll.u32 2131351028, %v213
        %v223 = vshrl.u32 2102212464, %v214
        %v224 = vor.u32 %v222, %v223
        %v225 = vshll.u32 2102212464, %v213
        %v226 = vshrl.u32 920167782, %v214
        %v227 = vor.u32 %v225, %v226
        %v228 = vshll.u32 920167782, %v213
        %v229 = vshrl.u32 1326507024, %v214
        %v230 = vor.u32 %v228, %v229
        %vm231 = vcmp.lt.s32.totalorder %v212, 1
        %vm232 = vcmp.lt.s32.totalorder %v212, 2
        %vm233 = vcmp.lt.s32.totalorder %v212, 3
        %vm234 = vcmp.lt.s32.totalorder %v212, 4
        %v235 = vsel %vm231, %v215, %v218
        %v236 = vsel %vm234, %v224, 2102212464
        %v237 = vsel %vm233, %v221, %v236
        %v238 = vsel %vm232, %v235, %v237
        %v239 = vsel %vm231, %v218, %v221
        %v240 = vsel %vm234, %v227, 920167782
        %v241 = vsel %vm233, %v224, %v240
        %v242 = vsel %vm232, %v239, %v241
        %v243 = vsel %vm231, %v221, %v224
        %v244 = vsel %vm234, %v230, 1326507024
        %v245 = vsel %vm233, %v227, %v244
        %v246 = vsel %vm232, %v243, %v245
        %v247 = vshll.u32 %v207, 8
        %v248 = vmul.u32.u64.compose %v247, %v246
        %v249 = vextract.low.u32 %v248
        %v250 = vextract.high.u32 %v248
        %v251 = vmul.u32.u64.compose %v247, %v242
        %v252 = vextract.low.u32 %v251
        %v253 = vextract.high.u32 %v251
        %v254 = vmul.u32 %v247, %v238
        %v255 = vadd.s32 %v250, %v252
        %vm256 = vc.u32 %v250, %v252
        %v257 = vadd.s32 %v253, 1
        %v258 = vsel %vm256, %v257, %v253
        %v259 = vadd.s32 %v254, %v258
        %v260 = vadd.s32 %v259, 536870912
        %v261 = vshrl.u32 %v260, 30
        %v262 = vshll.u32 %v261, 30
        %v263 = vsub.s32 %v259, %v262
        %vm264 = vcmp.lt.s32.totalorder %v263, 0
        %v265 = vsub.s32 0, %v263
        %v266 = vsel %vm264, %v265, %v263
        %v267 = vclz %v266
        %v268 = vsub.s32 %v267, 2
        %vm269 = vcmp.gt.s32.totalorder 0, %v268
        %v270 = vsel %vm269, 0, %v268
        %v271 = vsub.s32 32, %v270
        %v272 = vshll.u32 %v263, %v270
        %v273 = vshrl.u32 %v255, %v271
        %v274 = vor.u32 %v272, %v273
        %v275 = vsub.s32 4294967266, %v270
        %v276 = vadd.s32 %v275, 127
        %v277 = vshll.u32 %v276, 23
        %v278 = vor.u32 4788187, %v277
        %v279 = vand.u32 2147483647, %v278
        %v281 = vcvt.s32.f32 %v274
        %v282 = vmul.f32 %v281, %v279
        %v283 = vxor.u32 %v282, 2147483648
        %v284 = vsel %vm201, %v283, %v282
        %v285 = vsub.s32 4, %v261
        %v286 = vsel %vm201, %v285, %v261
        %v287 = vsel %vm200, %v198, %v284
        %v288 = vsel %vm200, 0, %v286
        %v289 = vcosq.f32.pop %v287
        %v290 = vsinq.f32.pop %v287
        %vm291 = vweird.f32 %v198
        %v292 = vand.u32 %v288, 3
        %vm293 = vcmp.lt.s32.totalorder %v292, 2
        %vm294 = vcmp.eq.s32.totalorder %v292, 0
        %v295 = vxor.u32 %v290, 2147483648
        %v296 = vsel %vm294, %v289, %v295
        %vm297 = vcmp.eq.s32.totalorder %v292, 2
        %v298 = vxor.u32 %v289, 2147483648
        %v299 = vsel %vm297, %v298, %v290
        %v300 = vsel %vm293, %v296, %v299
        %v301 = vsel %vm291, nan, %v300
        %v302 = vand.u32 2147483647, %v198
        %vm303 = vcmp.le.f32.partialorder %v302, 0.7853982
        %vm304 = vcmp.lt.s32.totalorder %v198, 0
        %v305 = vand.u32 %v198, 2139095040
        %v306 = vshrl.u32 %v305, 23
        %v307 = vsub.s32 %v306, 127
        %v308 = vand.u32 2147483647, %v198
        %v309 = vand.u32 %v308, 8388607
        %v310 = vor.u32 %v309, 8388608
        %v311 = vsub.s32 0, %v310
        %v312 = vadd.s32 %v307, 1
        %vm313 = vcmp.gt.s32.totalorder %v312, 0
        %v314 = vsel %vm313, %v312, 0
        %v315 = vshrl.u32 %v314, 5
        %v316 = vand.u32 %v314, 31
        %v317 = vsub.s32 32, %v316
        %v318 = vshrl.u32 683565275, %v317
        %v319 = vshll.u32 683565275, %v316
        %v320 = vshrl.u32 2475754826, %v317
        %v321 = vor.u32 %v319, %v320
        %v322 = vshll.u32 2475754826, %v316
        %v323 = vshrl.u32 2131351028, %v317
        %v324 = vor.u32 %v322, %v323
        %v325 = vshll.u32 2131351028, %v316
        %v326 = vshrl.u32 2102212464, %v317
        %v327 = vor.u32 %v325, %v326
        %v328 = vshll.u32 2102212464, %v316
        %v329 = vshrl.u32 920167782, %v317
        %v330 = vor.u32 %v328, %v329
        %v331 = vshll.u32 920167782, %v316
        %v332 = vshrl.u32 1326507024, %v317
        %v333 = vor.u32 %v331, %v332
        %vm334 = vcmp.lt.s32.totalorder %v315, 1
        %vm335 = vcmp.lt.s32.totalorder %v315, 2
        %vm336 = vcmp.lt.s32.totalorder %v315, 3
        %vm337 = vcmp.lt.s32.totalorder %v315, 4
        %v338 = vsel %vm334, %v318, %v321
        %v339 = vsel %vm337, %v327, 2102212464
        %v340 = vsel %vm336, %v324, %v339
        %v341 = vsel %vm335, %v338, %v340
        %v342 = vsel %vm334, %v321, %v324
        %v343 = vsel %vm337, %v330, 920167782
        %v344 = vsel %vm336, %v327, %v343
        %v345 = vsel %vm335, %v342, %v344
        %v346 = vsel %vm334, %v324, %v327
        %v347 = vsel %vm337, %v333, 1326507024
        %v348 = vsel %vm336, %v330, %v347
        %v349 = vsel %vm335, %v346, %v348
        %v350 = vshll.u32 %v310, 8
        %v351 = vmul.u32.u64.compose %v350, %v349
        %v352 = vextract.low.u32 %v351
        %v353 = vextract.high.u32 %v351
        %v354 = vmul.u32.u64.compose %v350, %v345
        %v355 = vextract.low.u32 %v354
        %v356 = vextract.high.u32 %v354
        %v357 = vmul.u32 %v350, %v341
        %v358 = vadd.s32 %v353, %v355
        %vm359 = vc.u32 %v353, %v355
        %v360 = vadd.s32 %v356, 1
        %v361 = vsel %vm359, %v360, %v356
        %v362 = vadd.s32 %v357, %v361
        %v363 = vadd.s32 %v362, 536870912
        %v364 = vshrl.u32 %v363, 30
        %v365 = vshll.u32 %v364, 30
        %v366 = vsub.s32 %v362, %v365
        %vm367 = vcmp.lt.s32.totalorder %v366, 0
        %v368 = vsub.s32 0, %v366
        %v369 = vsel %vm367, %v368, %v366
        %v370 = vclz %v369
        %v371 = vsub.s32 %v370, 2
        %vm372 = vcmp.gt.s32.totalorder 0, %v371
        %v373 = vsel %vm372, 0, %v371
        %v374 = vsub.s32 32, %v373
        %v375 = vshll.u32 %v366, %v373
        %v376 = vshrl.u32 %v358, %v374
        %v377 = vor.u32 %v375, %v376
        %v378 = vsub.s32 4294967266, %v373
        %v379 = vadd.s32 %v378, 127
        %v380 = vshll.u32 %v379, 23
        %v381 = vor.u32 4788187, %v380
        %v382 = vand.u32 2147483647, %v381
        %v384 = vcvt.s32.f32 %v377
        %v385 = vmul.f32 %v384, %v382
        %v386 = vxor.u32 %v385, 2147483648
        %v387 = vsel %vm304, %v386, %v385
        %v388 = vsub.s32 4, %v364
        %v389 = vsel %vm304, %v388, %v364
        %v390 = vsel %vm303, %v198, %v387
        %v391 = vsel %vm303, 0, %v389
        %v392 = vcosq.f32.pop %v390
        %v393 = vsinq.f32.pop %v390
        %vm394 = vweird.f32 %v198
        %v395 = vadd.s32 %v391, 3
        %v396 = vand.u32 %v395, 3
        %vm397 = vcmp.lt.s32.totalorder %v396, 2
        %vm398 = vcmp.eq.s32.totalorder %v396, 0
        %v399 = vxor.u32 %v393, 2147483648
        %v400 = vsel %vm398, %v392, %v399
        %vm401 = vcmp.eq.s32.totalorder %v396, 2
        %v402 = vxor.u32 %v392, 2147483648
        %v403 = vsel %vm401, %v402, %v393
        %v404 = vsel %vm397, %v400, %v403
        %v405 = vsel %vm394, nan, %v404
        %v406 = vlaneseq
        %v407 = vand.u32 %v406, 127
        %vm408 = vcmp.lt.s32.totalorder %v407, 0
        %v409 = vsub.s32 0, %v407
        %v410 = vsel %vm408, %v409, %v407
        %v411 = vshrl.u32 %v410, 1
        %v412 = vand.u32 %v410, 1
        %v413 = vsub.s32 0, %v412
        %v414 = vsel %vm408, %v413, %v412
        %vm415 = vcmp.ne.s32.totalorder %v414, 0
        %vm416 = vcmp.lt.s32.totalorder %v414, 0
        %vm417 = vmand %vm416, %vm415
        %v418 = vadd.s32 %v414, 2
        %v419 = vsel %vm417, %v418, %v414
        %vm420 = vcmp.eq.s32.totalorder %v419, 0
        %421 = vrot.lane.b32.xlu0 %v183, 127
        %v422 = vpop.permute.xlu0 %421
        %423 = vrot.lane.b32.xlu0 %v183, 1
        %v424 = vpop.permute.xlu0 %423
        %v425 = vsel %vm420, %v422, %v424
        %v426 = vmul.f32 %v301, %v183
        %v427 = vmul.f32 %v405, %v425
        %v428 = vadd.f32 %v426, %v427
        %429 = vst [vmem:[%s174] sm:$0xff] %v428
        %s430 = sand.u32 %s98, 1
        %s431 = scalar_lea.sflag [#allocation3], %s430
        %s432 = sand.u32 %s98, 1
        %s433 = smul.addr %s432, 8
        %s434 = scalar_lea.vmem [#allocation2], %s433
        // Predicated region
        $region33: #{tpu_custom_call.1} parent=31 // pred_check
          %p435 = pneg %p108
        $region34: #{tpu_custom_call.1} parent=31 // pred_check_branch
          %437 = sbr.rel (%p435) target = $region36
        $region35: #{tpu_custom_call.1} parent=31 // pred_region
          %s439 = ssub.s32 128, 128
          %440 = vsyncadd %s431, %s439
          %s441 = smul.addr %s17, 128
          %s442 = scalar_lea.hbm %s3, %s441
          %s444 = sshll.u32 %s434, 4
          %s445 = int_to_ptr.vmem [resolvable:$true] %s444
          %447 = dma.vmem_to_hbm [thread:$0]  %s445, 128, %s442, %s431
        $region36: #{tpu_custom_call.1} parent=31 // pred_fallthru
          _
      $region32: #{tpu_custom_call.1} parent=5 // pred_fallthru
        _
      %p448 = scmp.le.s32.totalorder 2, %s12
      // Predicated region
      $region37: #{tpu_custom_call.1} parent=5 // pred_check
        %p449 = pneg %p448
      $region38: #{tpu_custom_call.1} parent=5 // pred_check_branch
        %451 = sbr.rel (%p449) target = $region40
      $region39: #{tpu_custom_call.1} parent=5 // pred_region
        %s452 = ssub.s32 %s12, 2
        // Predicated region
        $region41: #{tpu_custom_call.1} parent=39 // pred_check
          %p453 = pneg %p114
        $region42: #{tpu_custom_call.1} parent=39 // pred_check_branch
          %455 = sbr.rel (%p453) target = $region44
        $region43: #{tpu_custom_call.1} parent=39 // pred_region
          %s456 = sand.u32 %s99, 1
          %s457 = scalar_lea.sflag [#allocation3], %s456
          %s458 = sand.u32 %s99, 1
          %s459 = smul.addr %s458, 8
          %s460 = scalar_lea.vmem [#allocation2], %s459
          %461 = dma.done %s457, 128
        $region44: #{tpu_custom_call.1} parent=39 // pred_fallthru
          _
      $region40: #{tpu_custom_call.1} parent=5 // pred_fallthru
        _
    $region6: #{tpu_custom_call.1} parent=1 // loop_footer
      %s16 = sadd.s32 1, %s12
    $region7: #{tpu_custom_call.1} parent=1 // loop_footer_branch
      %11 = sbr.rel target = $region3
    $region8: #{tpu_custom_call.1} parent=1 // loop_exit
      _
    %462 = vsyncpa [#allocation3], 1
    %s463 = scalar_lea.sflag [#allocation3], 1
    %464 = vsyncpa %s463, 1

</llo_original>
